<compile_context>
chip_gen: v7x
topology: tpu7x:2x2x1
jax: 0.10.0
libtpu: 0.0.40
codegen_flags: <defaults>
</compile_context>

<pallas_src>
import jax
import jax.numpy as jnp
from jax.experimental import pallas as pl
from jax.experimental.pallas import tpu as pltpu


def _round_up(x, m):
    return ((x + m - 1) // m) * m


def _cdiv(a, b):
    return (a + b - 1) // b


def _mlp_kernel(x_ref, w1_ref, b1_ref, w2_ref, b2_ref, o_ref, acc_ref):
    # grid = (batch tiles [parallel], hidden chunks [arbitrary/reduction])
    k = pl.program_id(1)

    @pl.when(k == 0)
    def _():
        acc_ref[...] = jnp.zeros_like(acc_ref)

    # GEMM1 on this hidden chunk -> bias -> LeakyReLU(0.2) -> GEMM2 accumulate.
    x = x_ref[...]
    h = jnp.dot(x, w1_ref[...], preferred_element_type=jnp.float32)
    h = h + b1_ref[...].astype(jnp.float32)
    h = jnp.maximum(h, 0.2 * h)                      # LeakyReLU(0.2), f32 on the VPU
    acc_ref[...] += jnp.dot(h.astype(w2_ref.dtype), w2_ref[...],
                            preferred_element_type=jnp.float32)

    @pl.when(k == pl.num_programs(1) - 1)
    def _():
        y = acc_ref[...] + b2_ref[...].astype(jnp.float32)
        o_ref[...] = y.astype(o_ref.dtype)


def multi_layer_percep(x, w1, b1, w2, b2, *, block_b=256, block_k_hid=512,
                       compute_dtype=jnp.bfloat16):
    """Fused MLP: LeakyReLU(x @ W1 + b1, 0.2) @ W2 + b2.

    x:  [B, D_in]
    w1: [D_in, D_hid]; b1: [D_hid] or [1, D_hid]
    w2: [D_hid, D_out]; b2: [D_out] or [1, D_out]
    compute_dtype: dtype used for the MXU inputs (accumulation is always f32).
    """
    out_dtype = x.dtype
    B, D_in = x.shape
    D_hid = w1.shape[1]
    D_out = w2.shape[1]
    assert w1.shape[0] == D_in and w2.shape[0] == D_hid

    b1 = b1.reshape(1, D_hid)
    b2 = b2.reshape(1, D_out)

    if compute_dtype is not None:
        x = x.astype(compute_dtype)
        w1 = w1.astype(compute_dtype)
        w2 = w2.astype(compute_dtype)
    mm_dtype = x.dtype
    mm_item = jnp.dtype(mm_dtype).itemsize
    o_item = jnp.dtype(out_dtype).itemsize

    # Sublane multiple for the matmul dtype (8 f32, 16 bf16/f16, 32 int8).
    sub = {4: 8, 2: 16, 1: 32}.get(mm_item, 8)

    # ---- batch tiling: pad only to the sublane multiple, then pick a tile size
    # that divides the padded batch with minimal waste (ragged batches OK). ----
    B_sub = _round_up(B, sub)
    n_b_tiles = max(1, _cdiv(B_sub, block_b))
    block_b = _round_up(_cdiv(B_sub, n_b_tiles), sub)
    B_pad = block_b * n_b_tiles

    # ---- hidden-dim chunking (bounds VMEM and overlaps weight DMA w/ MXU) ----
    Dp_hid = _round_up(D_hid, 128)
    n_hid = max(1, _cdiv(Dp_hid, block_k_hid))
    tk_hid = _round_up(_cdiv(Dp_hid, n_hid), 128)
    Dp_hid = tk_hid * n_hid

    Dp_out = _round_up(D_out, 128)   # lane-dense output stores (unmasked vst)

    # ---- padding (x's feature dim is left as-is: full-dim block, no HBM copy) ----
    x_p = x if B_pad == B else jnp.pad(x, ((0, B_pad - B), (0, 0)))
    w1_p = jnp.pad(w1, ((0, 0), (0, Dp_hid - D_hid))) if Dp_hid != D_hid else w1
    b1_p = jnp.pad(b1, ((0, 0), (0, Dp_hid - D_hid))) if Dp_hid != D_hid else b1
    if Dp_hid != D_hid or Dp_out != D_out:
        w2_p = jnp.pad(w2, ((0, Dp_hid - D_hid), (0, Dp_out - D_out)))
    else:
        w2_p = w2
    b2_p = jnp.pad(b2, ((0, 0), (0, Dp_out - D_out))) if Dp_out != D_out else b2

    grid = (n_b_tiles, n_hid)

    # ---- VMEM budget: double-buffered streamed tiles + f32 accumulator + h temp ----
    vmem_need = (
        2 * block_b * D_in * mm_item                  # x tile (double buffered)
        + 2 * (D_in * tk_hid + tk_hid) * mm_item      # W1 / b1 chunk
        + 2 * tk_hid * Dp_out * mm_item               # W2 chunk
        + Dp_out * mm_item                            # b2 (single buffered)
        + 2 * block_b * Dp_out * o_item               # out tile
        + block_b * Dp_out * 4                        # f32 accumulator scratch
        + block_b * tk_hid * 4                        # f32 h chunk temp
    )
    try:
        phys_vmem = int(pltpu.get_tpu_info().vmem_capacity_bytes)
    except Exception:
        phys_vmem = 64 << 20                          # conservative: v7x per-TC VMEM
    vmem_cap = int(0.85 * phys_vmem)
    vmem_limit = int(min(max(int(1.5 * vmem_need), 32 << 20), vmem_cap))

    cost = pl.CostEstimate(
        flops=2 * B_pad * D_in * Dp_hid + 2 * B_pad * Dp_hid * Dp_out,
        transcendentals=0,
        bytes_accessed=(x_p.size * mm_item
                        + (w1_p.size + b1_p.size + w2_p.size + b2_p.size) * mm_item
                        + B_pad * Dp_out * o_item),
    )

    # TODO(synk): optional int8 (v5e/v6e) / fp8 (v7x) weight path with per-channel
    # scales in the epilogue for the weight-bandwidth-bound small-batch regime.
    out_p = pl.pallas_call(
        _mlp_kernel,
        out_shape=jax.ShapeDtypeStruct((B_pad, Dp_out), out_dtype),
        grid_spec=pltpu.PrefetchScalarGridSpec(
            num_scalar_prefetch=0,
            grid=grid,
            in_specs=[
                pl.BlockSpec((block_b, D_in), lambda i, k: (i, 0)),    # x tile
                pl.BlockSpec((D_in, tk_hid), lambda i, k: (0, k)),     # W1 chunk
                pl.BlockSpec((1, tk_hid), lambda i, k: (0, k)),        # b1 chunk
                pl.BlockSpec((tk_hid, Dp_out), lambda i, k: (k, 0)),   # W2 chunk
                pl.BlockSpec((1, Dp_out), lambda i, k: (0, 0),
                             pipeline_mode=pl.Buffered(1)),            # b2 resident
            ],
            out_specs=pl.BlockSpec((block_b, Dp_out), lambda i, k: (i, 0)),
            scratch_shapes=[pltpu.VMEM((block_b, Dp_out), jnp.float32)],
        ),
        compiler_params=pltpu.CompilerParams(
            dimension_semantics=("parallel", "arbitrary"),
            vmem_limit_bytes=vmem_limit,
        ),
        cost_estimate=cost,
    )(x_p, w1_p, b1_p, w2_p, b2_p)

    return out_p[:B, :D_out]


def init_params(key, input_dim, output_dim, dtype=jnp.float32):
    """PyTorch-Linear-style init: uniform(-1/sqrt(fan_in), 1/sqrt(fan_in))."""
    hidden = input_dim // 2
    k1, k2, k3, k4 = jax.random.split(key, 4)
    bound1 = 1.0 / jnp.sqrt(input_dim)
    bound2 = 1.0 / jnp.sqrt(hidden)
    w1 = jax.random.uniform(k1, (input_dim, hidden), dtype, -bound1, bound1)
    b1 = jax.random.uniform(k2, (1, hidden), dtype, -bound1, bound1)
    w2 = jax.random.uniform(k3, (hidden, output_dim), dtype, -bound2, bound2)
    b2 = jax.random.uniform(k4, (1, output_dim), dtype, -bound2, bound2)
    return w1, b1, w2, b2


def reference_mlp(x, w1, b1, w2, b2):
    h = x @ w1 + b1
    h = jnp.where(h > 0, h, 0.2 * h)
    return h @ w2 + b2


if __name__ == "__main__":
    key = jax.random.PRNGKey(0)
    kx, kp = jax.random.split(key)

    B, input_dim, output_dim = 8, 32, 16
    x = jax.random.normal(kx, (B, input_dim), jnp.float32)
    w1, b1, w2, b2 = init_params(kp, input_dim, output_dim)

    ref = reference_mlp(x, w1, b1, w2, b2)

    # Exact-precision path (f32 matmuls): tight tolerance vs. reference.
    out_f32 = multi_layer_percep(x, w1, b1, w2, b2, compute_dtype=jnp.float32)
    out_f32 = jax.block_until_ready(out_f32)
    assert out_f32.shape == (B, output_dim)
    assert jnp.allclose(out_f32, ref, atol=1e-5, rtol=1e-5), "f32 path mismatch"

    # Default path (bf16 matmul inputs, f32 accumulation): looser tolerance.
    out_bf16 = multi_layer_percep(x, w1, b1, w2, b2)
    out_bf16 = jax.block_until_ready(out_bf16)
    assert out_bf16.shape == (B, output_dim)
    assert jnp.allclose(out_bf16, ref, atol=5e-2, rtol=5e-2), "bf16 path mismatch"

    print("KERNEL_OK")
</pallas_src>

<mosaic_0001>
module attributes {stable_mosaic.version = 11 : i64} {
  func.func @_mlp_kernel(%arg0: i32, %arg1: i32, %arg2: memref<8x32xf32, #tpu.memory_space<vmem>>, %arg3: memref<32x128xf32, #tpu.memory_space<vmem>>, %arg4: memref<1x128xf32, #tpu.memory_space<vmem>>, %arg5: memref<128x128xf32, #tpu.memory_space<vmem>>, %arg6: memref<1x128xf32, #tpu.memory_space<vmem>>, %arg7: memref<8x128xf32, #tpu.memory_space<vmem>>, %arg8: memref<8x128xf32, #tpu.memory_space<vmem>>) attributes {dimension_semantics = [#tpu.dimension_semantics<parallel>, #tpu.dimension_semantics<arbitrary>], iteration_bounds = array<i64: 1, 1>, scalar_prefetch = 0 : i64, scratch_operands = 1 : i64, tpu.core_type = #tpu.core_type<tc>, window_params = [{transform_indices = @transform_0, window_bounds = array<i64: 8, 32>}, {transform_indices = @transform_1, window_bounds = array<i64: 32, 128>}, {transform_indices = @transform_2, window_bounds = array<i64: 1, 128>}, {transform_indices = @transform_3, window_bounds = array<i64: 128, 128>}, {pipeline_mode = #tpu.pipeline_mode<synchronous>, transform_indices = @transform_4, window_bounds = array<i64: 1, 128>}, {transform_indices = @transform_5, window_bounds = array<i64: 8, 128>}]} {
    %c0_i32 = arith.constant 0 : i32
    %0 = arith.cmpi eq, %arg1, %c0_i32 : i32
    %1 = arith.extui %0 : i1 to i32
    %c0_i32_0 = arith.constant 0 : i32
    %2 = arith.cmpi ne, %1, %c0_i32_0 : i32
    scf.if %2 {
      %cst_16 = arith.constant 0.000000e+00 : f32
      %20 = vector.broadcast %cst_16 : f32 to vector<8x128xf32>
      %c0_17 = arith.constant 0 : index
      %c0_18 = arith.constant 0 : index
      %21 = vector.load %arg8[%c0_17, %c0_18] : memref<8x128xf32, #tpu.memory_space<vmem>>, vector<8x128xf32>
      tpu.vector_store %arg8[%c0_17, %c0_18], %20 {strides = array<i32>} : memref<8x128xf32, #tpu.memory_space<vmem>>, vector<8x128xf32>,
    } else {
    }
    %c0 = arith.constant 0 : index
    %c0_1 = arith.constant 0 : index
    %3 = vector.load %arg2[%c0, %c0_1] : memref<8x32xf32, #tpu.memory_space<vmem>>, vector<8x32xf32>
    %c0_2 = arith.constant 0 : index
    %c0_3 = arith.constant 0 : index
    %4 = vector.load %arg3[%c0_2, %c0_3] : memref<32x128xf32, #tpu.memory_space<vmem>>, vector<32x128xf32>
    %cst = arith.constant dense<0.000000e+00> : vector<8x128xf32>
    %5 = tpu.matmul %3, %4, %cst {dimension_numbers = #tpu.dot_dimension_numbers<[1], [0], [0], [1], [0, 0, 1, 1], [], []>} : vector<8x32xf32>, vector<32x128xf32>, vector<8x128xf32> -> vector<8x128xf32>
    %c0_4 = arith.constant 0 : index
    %c0_5 = arith.constant 0 : index
    %6 = vector.load %arg4[%c0_4, %c0_5] : memref<1x128xf32, #tpu.memory_space<vmem>>, vector<1x128xf32>
    %7 = vector.broadcast %6 : vector<1x128xf32> to vector<8x128xf32>
    %8 = arith.addf %5, %7 : vector<8x128xf32>
    %cst_6 = arith.constant 2.000000e-01 : f32
    %9 = vector.broadcast %cst_6 : f32 to vector<8x128xf32>
    %10 = arith.mulf %9, %8 : vector<8x128xf32>
    %11 = arith.maximumf %8, %10 : vector<8x128xf32>
    %c0_7 = arith.constant 0 : index
    %c0_8 = arith.constant 0 : index
    %12 = vector.load %arg8[%c0_7, %c0_8] : memref<8x128xf32, #tpu.memory_space<vmem>>, vector<8x128xf32>
    %c0_9 = arith.constant 0 : index
    %c0_10 = arith.constant 0 : index
    %13 = vector.load %arg5[%c0_9, %c0_10] : memref<128x128xf32, #tpu.memory_space<vmem>>, vector<128x128xf32>
    %cst_11 = arith.constant dense<0.000000e+00> : vector<8x128xf32>
    %14 = tpu.matmul %11, %13, %cst_11 {dimension_numbers = #tpu.dot_dimension_numbers<[1], [0], [0], [1], [0, 0, 1, 1], [], []>} : vector<8x128xf32>, vector<128x128xf32>, vector<8x128xf32> -> vector<8x128xf32>
    %15 = arith.addf %12, %14 : vector<8x128xf32>
    %c0_12 = arith.constant 0 : index
    %c0_13 = arith.constant 0 : index
    %16 = vector.load %arg8[%c0_12, %c0_13] : memref<8x128xf32, #tpu.memory_space<vmem>>, vector<8x128xf32>
    tpu.vector_store %arg8[%c0_12, %c0_13], %15 {strides = array<i32>} : memref<8x128xf32, #tpu.memory_space<vmem>>, vector<8x128xf32>,
    %c0_i32_14 = arith.constant 0 : i32
    %17 = arith.cmpi eq, %arg1, %c0_i32_14 : i32
    %18 = arith.extui %17 : i1 to i32
    %c0_i32_15 = arith.constant 0 : i32
    %19 = arith.cmpi ne, %18, %c0_i32_15 : i32
    scf.if %19 {
      %c0_16 = arith.constant 0 : index
      %c0_17 = arith.constant 0 : index
      %20 = vector.load %arg8[%c0_16, %c0_17] : memref<8x128xf32, #tpu.memory_space<vmem>>, vector<8x128xf32>
      %c0_18 = arith.constant 0 : index
      %c0_19 = arith.constant 0 : index
      %21 = vector.load %arg6[%c0_18, %c0_19] : memref<1x128xf32, #tpu.memory_space<vmem>>, vector<1x128xf32>
      %22 = vector.broadcast %21 : vector<1x128xf32> to vector<8x128xf32>
      %23 = arith.addf %20, %22 : vector<8x128xf32>
      %c0_20 = arith.constant 0 : index
      %c0_21 = arith.constant 0 : index
      %24 = vector.load %arg7[%c0_20, %c0_21] : memref<8x128xf32, #tpu.memory_space<vmem>>, vector<8x128xf32>
      tpu.vector_store %arg7[%c0_20, %c0_21], %23 {strides = array<i32>} : memref<8x128xf32, #tpu.memory_space<vmem>>, vector<8x128xf32>,
    } else {
    }
    return
  }
  func.func @transform_0(%arg0: i32, %arg1: i32) -> (i32, i32) {
    %c0_i32 = arith.constant 0 : i32
    %c0_i32_0 = arith.constant 0 : i32
    return %arg0, %c0_i32 : i32, i32
  }
  func.func @transform_1(%arg0: i32, %arg1: i32) -> (i32, i32) {
    %c0_i32 = arith.constant 0 : i32
    %c0_i32_0 = arith.constant 0 : i32
    return %c0_i32, %arg1 : i32, i32
  }
  func.func @transform_2(%arg0: i32, %arg1: i32) -> (i32, i32) {
    %c0_i32 = arith.constant 0 : i32
    %c0_i32_0 = arith.constant 0 : i32
    return %c0_i32, %arg1 : i32, i32
  }
  func.func @transform_3(%arg0: i32, %arg1: i32) -> (i32, i32) {
    %c0_i32 = arith.constant 0 : i32
    %c0_i32_0 = arith.constant 0 : i32
    return %arg1, %c0_i32 : i32, i32
  }
  func.func @transform_4(%arg0: i32, %arg1: i32) -> (i32, i32) {
    %c0_i32 = arith.constant 0 : i32
    %c0_i32_0 = arith.constant 0 : i32
    %c0_i32_1 = arith.constant 0 : i32
    return %c0_i32, %c0_i32_0 : i32, i32
  }
  func.func @transform_5(%arg0: i32, %arg1: i32) -> (i32, i32) {
    %c0_i32 = arith.constant 0 : i32
    %c0_i32_0 = arith.constant 0 : i32
    return %arg0, %c0_i32 : i32, i32
  }
}

</mosaic_0001>

<llo_original>
// kernel: tpu_custom_call.1
$region0: #{tpu_custom_call.1}
  #allocation0 [shape = 'u32[]', space=smem, size = 0x4, offset = 0x4, fixed_abs, tag = 'smem constant byte address 0x4 - core index']
  #allocation1 [shape = 'u32[144,128]{1,0:T(1,128)}', space=vmem, size = 0x12000, scoped, tag = 'internal scratch']
  #allocation2 [shape = 'f32[8,128]{1,0:T(8,128)}', space=vmem, size = 0x1000, scoped, tag = 'scratch operand']
  %s0 = inlined_call_operand.hbm [shape: f32[8,32], index: 0, kind: input, shape index: {}]
  %s1 = inlined_call_operand.hbm [shape: f32[32,128], index: 1, kind: input, shape index: {}]
  %s2 = inlined_call_operand.vmem [shape: f32[1,128], index: 2, kind: input, shape index: {}]
  %s3 = inlined_call_operand.hbm [shape: f32[128,128], index: 3, kind: input, shape index: {}]
  %s4 = inlined_call_operand.vmem [shape: f32[1,128], index: 4, kind: input, shape index: {}]
  %s5 = inlined_call_operand.hbm [shape: f32[8,128], index: 5, kind: output, shape index: {}]
  %s6 = sld [smem:[#allocation0]]
  $region50: #{tpu_custom_call.1} parent=0
    _
  %s8 = ssub.s32 1, %s6
  %s9 = scalar_select 0, %s8, %s6
  $region1: #{tpu_custom_call.1} parent=0
    #allocation3 [shape = 'u8[4096]{0}', space=vmem, size = 0x1000, scoped, tag = 'input window, operand 0, single buffered']
    #allocation4 [shape = 's32[1]{0}', space=sflag, size = 0x4, scoped, tag = 'scoped memory for tpu_custom_call.1']
    #allocation5 [shape = 's32[1]{0}', space=sflag, size = 0x4, scoped, tag = 'scoped memory for tpu_custom_call.1']
    #allocation6 [shape = 'u8[16384]{0}', space=vmem, size = 0x4000, scoped, tag = 'input window, operand 1, single buffered']
    #allocation7 [shape = 's32[1]{0}', space=sflag, size = 0x4, scoped, tag = 'scoped memory for tpu_custom_call.1']
    #allocation8 [shape = 'u8[65536]{0}', space=vmem, size = 0x10000, scoped, tag = 'input window, operand 3, single buffered']
    #allocation9 [shape = 'u8[4096]{0}', space=vmem, size = 0x1000, scoped, tag = 'output window, operand 0, single buffered']
    %10 = vsyncpa [#allocation4], 0
    %11 = vsyncpa [#allocation7], 0
    %12 = vsyncpa [#allocation5], 0
    // Predicated region
    $region2: #{tpu_custom_call.1} parent=1 // pred_check
      _
    $region3: #{tpu_custom_call.1} parent=1 // pred_check_branch
      %14 = sbr.rel (0) target = $region5
    $region4: #{tpu_custom_call.1} parent=1 // pred_region
      %s16 = ssub.s32 128, 128
      %17 = vsyncadd [#allocation4], %s16
      %s19 = sshll.u32 [#allocation3], 4
      %s20 = int_to_ptr.vmem [resolvable:$true] %s19
      %22 = dma.hbm_to_vmem [thread:$0]  %s0, 128, %s20, [#allocation4]
    $region5: #{tpu_custom_call.1} parent=1 // pred_fallthru
      _
    // Predicated region
    $region6: #{tpu_custom_call.1} parent=1 // pred_check
      _
    $region7: #{tpu_custom_call.1} parent=1 // pred_check_branch
      %24 = sbr.rel (0) target = $region9
    $region8: #{tpu_custom_call.1} parent=1 // pred_region
      %s26 = ssub.s32 512, 512
      %27 = vsyncadd [#allocation7], %s26
      %s28 = sshll.u32 [#allocation6], 4
      %s29 = int_to_ptr.vmem [resolvable:$true] %s28
      %34 = dma.hbm_to_vmem [thread:$0]  %s1, 512, %s29, [#allocation7], 128, 128, 8
    $region9: #{tpu_custom_call.1} parent=1 // pred_fallthru
      _
    // Predicated region
    $region10: #{tpu_custom_call.1} parent=1 // pred_check
      _
    $region11: #{tpu_custom_call.1} parent=1 // pred_check_branch
      %36 = sbr.rel (0) target = $region13
    $region12: #{tpu_custom_call.1} parent=1 // pred_region
      _
    $region13: #{tpu_custom_call.1} parent=1 // pred_fallthru
      _
    // Predicated region
    $region14: #{tpu_custom_call.1} parent=1 // pred_check
      _
    $region15: #{tpu_custom_call.1} parent=1 // pred_check_branch
      %38 = sbr.rel (0) target = $region17
    $region16: #{tpu_custom_call.1} parent=1 // pred_region
      %s40 = ssub.s32 2048, 2048
      %41 = vsyncadd [#allocation7], %s40
      %s42 = sshll.u32 [#allocation8], 4
      %s43 = int_to_ptr.vmem [resolvable:$true] %s42
      %48 = dma.hbm_to_vmem [thread:$0]  %s3, 2048, %s43, [#allocation7], 128, 128, 8
    $region17: #{tpu_custom_call.1} parent=1 // pred_fallthru
      _
    // Predicated region
    $region18: #{tpu_custom_call.1} parent=1 // pred_check
      _
    $region19: #{tpu_custom_call.1} parent=1 // pred_check_branch
      %50 = sbr.rel (0) target = $region21
    $region20: #{tpu_custom_call.1} parent=1 // pred_region
      _
    $region21: #{tpu_custom_call.1} parent=1 // pred_fallthru
      _
    // Predicated region
    $region22: #{tpu_custom_call.1} parent=1 // pred_check
      _
    $region23: #{tpu_custom_call.1} parent=1 // pred_check_branch
      %52 = sbr.rel (0) target = $region25
    $region24: #{tpu_custom_call.1} parent=1 // pred_region
      %53 = dma.done [#allocation4], 128
    $region25: #{tpu_custom_call.1} parent=1 // pred_fallthru
      _
    // Predicated region
    $region26: #{tpu_custom_call.1} parent=1 // pred_check
      _
    $region27: #{tpu_custom_call.1} parent=1 // pred_check_branch
      %55 = sbr.rel (0) target = $region29
    $region28: #{tpu_custom_call.1} parent=1 // pred_region
      %56 = dma.done [#allocation7], 512
    $region29: #{tpu_custom_call.1} parent=1 // pred_fallthru
      _
    // Predicated region
    $region30: #{tpu_custom_call.1} parent=1 // pred_check
      _
    $region31: #{tpu_custom_call.1} parent=1 // pred_check_branch
      %58 = sbr.rel (0) target = $region33
    $region32: #{tpu_custom_call.1} parent=1 // pred_region
      %59 = dma.done [#allocation7], 2048
    $region33: #{tpu_custom_call.1} parent=1 // pred_fallthru
      _
    %p60 = scmp.eq.s32.totalorder 0, 0
    // Predicated region
    $region34: #{tpu_custom_call.1} parent=1 // pred_check
      %p61 = pneg %p60
    $region35: #{tpu_custom_call.1} parent=1 // pred_check_branch
      %63 = sbr.rel (%p61) target = $region37
    $region36: #{tpu_custom_call.1} parent=1 // pred_region
      %64 = vst [vmem:[#allocation2] sm:$0xff] 0.0
    $region37: #{tpu_custom_call.1} parent=1 // pred_fallthru
      _
    %v65 = vld [vmem:[#allocation3] sm:$0xff]
    %v66 = vld [vmem:[#allocation6] sm:$0xff]
    %v67 = vld [vmem:[#allocation6 + $0x8] sm:$0xff]
    %v68 = vld [vmem:[#allocation6 + $0x10] sm:$0xff]
    %v69 = vld [vmem:[#allocation6 + $0x18] sm:$0xff]
    %v70 = vld [vmem:[%s2] sm:$0x1]
    %v72 = vlaneseq
    %v73 = vshrl.u32 %v72, 7
    %v74 = vsub.s32 0, %v73
    %v75 = vrot.slane %v70, %v74
    %vm77 = vcmask 261120
    %v79 = vsel %vm77, %v65, 0
    %81 = vmatprep.subr.mxu0 0.0
    %82 = vmatpush1.msra.mxu0 %v66
    %83 = vmatprep.subr.mxu0 0.0
    %84 = vmatpush1.msra.mxu0 %v67
    %85 = vmatprep.subr.mxu0 0.0
    %86 = vmatpush1.msra.mxu0 %v68
    %87 = vmatprep.subr.mxu0 0.0
    %88 = vmatpush1.msra.mxu0 %v69
    %89 = vmatprep.subr.mxu0 0.0
    %90 = vmatpush1.msra.mxu0 0.0
    %91 = vmatprep.subr.mxu0 0.0
    %92 = vmatpush1.msra.mxu0 0.0
    %93 = vmatprep.subr.mxu0 0.0
    %94 = vmatpush1.msra.mxu0 0.0
    %95 = vmatprep.subr.mxu0 0.0
    %96 = vmatpush1.msra.mxu0 0.0
    %97 = vmatprep.subr.mxu0 0.0
    %98 = vmatpush1.msra.mxu0 0.0
    %99 = vmatprep.subr.mxu0 0.0
    %100 = vmatpush1.msra.mxu0 0.0
    %101 = vmatprep.subr.mxu0 0.0
    %102 = vmatpush1.msra.mxu0 0.0
    %103 = vmatprep.subr.mxu0 0.0
    %104 = vmatpush1.msra.mxu0 0.0
    %105 = vmatprep.subr.mxu0 0.0
    %106 = vmatpush1.msra.mxu0 0.0
    %107 = vmatprep.subr.mxu0 0.0
    %108 = vmatpush1.msra.mxu0 0.0
    %109 = vmatprep.subr.mxu0 0.0
    %110 = vmatpush1.msra.mxu0 0.0
    %111 = vmatprep.subr.mxu0 0.0
    %112 = vmatpush1.msra.mxu0 0.0
    %113 = vmatprep.subr.mxu0 0.0
    %114 = vmatpush1.msra.mxu0 0.0
    %115 = vmatprep.subr.mxu0 0.0
    %116 = vmatpush1.msra.mxu0 0.0
    %117 = vmatprep.subr.mxu0 0.0
    %118 = vmatpush1.msra.mxu0 0.0
    %119 = vmatprep.subr.mxu0 0.0
    %120 = vmatpush1.msra.mxu0 0.0
    %121 = vmatprep.subr.mxu0 0.0
    %122 = vmatpush1.msra.mxu0 0.0
    %123 = vmatprep.subr.mxu0 0.0
    %124 = vmatpush1.msra.mxu0 0.0
    %125 = vmatprep.subr.mxu0 0.0
    %126 = vmatpush1.msra.mxu0 0.0
    %127 = vmatprep.subr.mxu0 0.0
    %128 = vmatpush1.msra.mxu0 0.0
    %129 = vmatprep.subr.mxu0 0.0
    %130 = vmatpush1.msra.mxu0 0.0
    %131 = vmatprep.subr.mxu0 0.0
    %132 = vmatpush1.msra.mxu0 0.0
    %133 = vmatprep.subr.mxu0 0.0
    %134 = vmatpush1.msra.mxu0 0.0
    %135 = vmatprep.subr.mxu0 0.0
    %136 = vmatpush1.msra.mxu0 0.0
    %137 = vmatprep.subr.mxu0 0.0
    %138 = vmatpush1.msra.mxu0 0.0
    %139 = vmatprep.subr.mxu0 0.0
    %140 = vmatpush1.msra.mxu0 0.0
    %141 = vmatprep.subr.mxu0 0.0
    %142 = vmatpush1.msra.mxu0 0.0
    %143 = vmatprep.subr.mxu0 0.0
    %144 = vmatpush1.msra.mxu0 0.0
    %145 = vmatprep.mubr.f32.mxu0 0.0
    %146 = vmatmul.mubr.f32.gmra.mrb[0].mxu0 %v79
    %v147 = vpop.f32.mrb[0].mxu0
    %v148 = vadd.f32 %v75, %v147
    %v149 = vpop.f32.mrb[0].mxu0
    %150 = vdwg.mxu0
    %v151 = vmul.f32 %v148, 0.2
    %v152 = vmax.f32 %v148, %v151
    %v153 = vld [vmem:[#allocation2] sm:$0xff]
    %v154 = vld [vmem:[#allocation8] sm:$0xff]
    %v155 = vld [vmem:[#allocation8 + $0x8] sm:$0xff]
    %v156 = vld [vmem:[#allocation8 + $0x10] sm:$0xff]
    %v157 = vld [vmem:[#allocation8 + $0x18] sm:$0xff]
    %v158 = vld [vmem:[#allocation8 + $0x20] sm:$0xff]
    %v159 = vld [vmem:[#allocation8 + $0x28] sm:$0xff]
    %v160 = vld [vmem:[#allocation8 + $0x30] sm:$0xff]
    %v161 = vld [vmem:[#allocation8 + $0x38] sm:$0xff]
    %v162 = vld [vmem:[#allocation8 + $0x40] sm:$0xff]
    %v163 = vld [vmem:[#allocation8 + $0x48] sm:$0xff]
    %v164 = vld [vmem:[#allocation8 + $0x50] sm:$0xff]
    %v165 = vld [vmem:[#allocation8 + $0x58] sm:$0xff]
    %v166 = vld [vmem:[#allocation8 + $0x60] sm:$0xff]
    %v167 = vld [vmem:[#allocation8 + $0x68] sm:$0xff]
    %v168 = vld [vmem:[#allocation8 + $0x70] sm:$0xff]
    %v169 = vld [vmem:[#allocation8 + $0x78] sm:$0xff]
    %170 = vmatprep.subr.mxu0 0.0
    %171 = vmatpush1.msra.mxu0 %v154
    %172 = vmatprep.subr.mxu0 0.0
    %173 = vmatpush1.msra.mxu0 %v155
    %174 = vmatprep.subr.mxu0 0.0
    %175 = vmatpush1.msra.mxu0 %v156
    %176 = vmatprep.subr.mxu0 0.0
    %177 = vmatpush1.msra.mxu0 %v157
    %178 = vmatprep.subr.mxu0 0.0
    %179 = vmatpush1.msra.mxu0 %v158
    %180 = vmatprep.subr.mxu0 0.0
    %181 = vmatpush1.msra.mxu0 %v159
    %182 = vmatprep.subr.mxu0 0.0
    %183 = vmatpush1.msra.mxu0 %v160
    %184 = vmatprep.subr.mxu0 0.0
    %185 = vmatpush1.msra.mxu0 %v161
    %186 = vmatprep.subr.mxu0 0.0
    %187 = vmatpush1.msra.mxu0 %v162
    %188 = vmatprep.subr.mxu0 0.0
    %189 = vmatpush1.msra.mxu0 %v163
    %190 = vmatprep.subr.mxu0 0.0
    %191 = vmatpush1.msra.mxu0 %v164
    %192 = vmatprep.subr.mxu0 0.0
    %193 = vmatpush1.msra.mxu0 %v165
    %194 = vmatprep.subr.mxu0 0.0
    %195 = vmatpush1.msra.mxu0 %v166
    %196 = vmatprep.subr.mxu0 0.0
    %197 = vmatpush1.msra.mxu0 %v167
    %198 = vmatprep.subr.mxu0 0.0
    %199 = vmatpush1.msra.mxu0 %v168
    %200 = vmatprep.subr.mxu0 0.0
    %201 = vmatpush1.msra.mxu0 %v169
    %202 = vmatprep.subr.mxu0 0.0
    %203 = vmatpush1.msra.mxu0 0.0
    %204 = vmatprep.subr.mxu0 0.0
    %205 = vmatpush1.msra.mxu0 0.0
    %206 = vmatprep.subr.mxu0 0.0
    %207 = vmatpush1.msra.mxu0 0.0
    %208 = vmatprep.subr.mxu0 0.0
    %209 = vmatpush1.msra.mxu0 0.0
    %210 = vmatprep.subr.mxu0 0.0
    %211 = vmatpush1.msra.mxu0 0.0
    %212 = vmatprep.subr.mxu0 0.0
    %213 = vmatpush1.msra.mxu0 0.0
    %214 = vmatprep.subr.mxu0 0.0
    %215 = vmatpush1.msra.mxu0 0.0
    %216 = vmatprep.subr.mxu0 0.0
    %217 = vmatpush1.msra.mxu0 0.0
    %218 = vmatprep.subr.mxu0 0.0
    %219 = vmatpush1.msra.mxu0 0.0
    %220 = vmatprep.subr.mxu0 0.0
    %221 = vmatpush1.msra.mxu0 0.0
    %222 = vmatprep.subr.mxu0 0.0
    %223 = vmatpush1.msra.mxu0 0.0
    %224 = vmatprep.subr.mxu0 0.0
    %225 = vmatpush1.msra.mxu0 0.0
    %226 = vmatprep.subr.mxu0 0.0
    %227 = vmatpush1.msra.mxu0 0.0
    %228 = vmatprep.subr.mxu0 0.0
    %229 = vmatpush1.msra.mxu0 0.0
    %230 = vmatprep.subr.mxu0 0.0
    %231 = vmatpush1.msra.mxu0 0.0
    %232 = vmatprep.subr.mxu0 0.0
    %233 = vmatpush1.msra.mxu0 0.0
    %234 = vmatprep.mubr.f32.mxu0 0.0
    %235 = vmatmul.mubr.f32.gmra.mrb[0].mxu0 %v152
    %v236 = vpop.f32.mrb[0].mxu0
    %v237 = vadd.f32 0.0, %v236
    %v238 = vpop.f32.mrb[0].mxu0
    %239 = vdwg.mxu0
    %v240 = vadd.f32 %v153, %v237
    %241 = vst [vmem:[#allocation2] sm:$0xff] %v240
    // Predicated region
    $region38: #{tpu_custom_call.1} parent=1 // pred_check
      %p242 = pneg %p60
    $region39: #{tpu_custom_call.1} parent=1 // pred_check_branch
      %244 = sbr.rel (%p242) target = $region41
    $region40: #{tpu_custom_call.1} parent=1 // pred_region
      %v245 = vld [vmem:[#allocation2] sm:$0xff]
      %v246 = vld [vmem:[%s4] sm:$0x1]
      %v248 = vlaneseq
      %v249 = vshrl.u32 %v248, 7
      %v250 = vsub.s32 0, %v249
      %v251 = vrot.slane %v246, %v250
      %v253 = vadd.f32 %v245, %v251
      %254 = vst [vmem:[#allocation9] sm:$0xff] %v253
    $region41: #{tpu_custom_call.1} parent=1 // pred_fallthru
      _
    // Predicated region
    $region42: #{tpu_custom_call.1} parent=1 // pred_check
      _
    $region43: #{tpu_custom_call.1} parent=1 // pred_check_branch
      %256 = sbr.rel (0) target = $region45
    $region44: #{tpu_custom_call.1} parent=1 // pred_region
      %s258 = ssub.s32 128, 128
      %259 = vsyncadd [#allocation5], %s258
      %s261 = sshll.u32 [#allocation9], 4
      %s262 = int_to_ptr.vmem [resolvable:$true] %s261
      %264 = dma.vmem_to_hbm [thread:$0]  %s262, 128, %s5, [#allocation5]
    $region45: #{tpu_custom_call.1} parent=1 // pred_fallthru
      _
    // Predicated region
    $region46: #{tpu_custom_call.1} parent=1 // pred_check
      _
    $region47: #{tpu_custom_call.1} parent=1 // pred_check_branch
      %266 = sbr.rel (0) target = $region49
    $region48: #{tpu_custom_call.1} parent=1 // pred_region
      %267 = dma.done [#allocation5], 128
    $region49: #{tpu_custom_call.1} parent=1 // pred_fallthru
      _
    %268 = vsyncpa [#allocation4], 1
    %269 = vsyncpa [#allocation7], 1
    %270 = vsyncpa [#allocation5], 1

</llo_original>
